<compile_context>
chip_gen: v5e
topology: v5e:2x2
jax: 0.10.0
libtpu: 0.0.40
codegen_flags: <defaults>
</compile_context>

<pallas_src>
import functools

import jax
import jax.numpy as jnp
from jax import lax
from jax.experimental import pallas as pl
from jax.experimental.pallas import tpu as pltpu


def _conv_lstm_kernel(x_ref,        # (S*B, Cin)        time-major, flattened rows r = t*B + b
                      wconv_ref,    # (Cin, 3*Cconv)    fused conv taps [t-1 | t | t+1]
                      bconv_ref,    # (1, Cconv)
                      wih_ref,      # (Cconv, 4H)       LSTM input weights  (i|f|g|o)
                      whh_ref,      # (H, 4H)           LSTM hidden weights (i|f|g|o)
                      blstm_ref,    # (1, 4H)           b_ih + b_hh
                      wfc_ref,      # (H, O)
                      bfc_ref,      # (1, O)
                      out_ref,      # (B, O)
                      conv_ref,     # VMEM scratch (S*B, Cconv)
                      *, seq_len, batch):
    S, B = seq_len, batch
    SB = S * B
    Cconv = bconv_ref.shape[1]
    H = whh_ref.shape[0]

    # ---------------- Conv1d(k=3, pad=1) + ReLU -------------------------------
    # One fused matmul for all three taps: y = x @ [w0 | w1 | w2].
    x2 = x_ref[...]                                                   # (S*B, Cin)
    y = jnp.dot(x2, wconv_ref[...], preferred_element_type=jnp.float32)  # (S*B, 3*Cconv)
    y_prev = y[:, 0 * Cconv:1 * Cconv]    # x[t]   @ w0  -> contributes to conv[t+1]
    y_curr = y[:, 1 * Cconv:2 * Cconv]    # x[t]   @ w1  -> contributes to conv[t]
    y_next = y[:, 2 * Cconv:3 * Cconv]    # x[t]   @ w2  -> contributes to conv[t-1]

    # conv[t] = x[t-1]@w0 + x[t]@w1 + x[t+1]@w2 + b   (zero padded at the ends)
    # Shifted-slice accumulation into the scratch ref (pure addressing, no concat copies).
    conv_ref[...] = y_curr + bconv_ref[...]
    conv_ref[B:SB, :] += y_prev[0:SB - B, :]          # conv[t] += y_prev[t-1]
    conv_ref[0:SB - B, :] += y_next[B:SB, :]          # conv[t] += y_next[t+1]

    conv = jnp.maximum(conv_ref[...], 0.0)            # (S*B, Cconv)

    # ---------------- LSTM (batch_first, single layer) ------------------------
    # Hoist the input-to-gate projection (and bias) out of the serial recurrence:
    # one big matmul for all S timesteps.
    xg = (jnp.dot(conv, wih_ref[...], preferred_element_type=jnp.float32)
          + blstm_ref[...])                           # (S*B, 4H), gate order i|f|g|o

    w_hh = whh_ref[...]
    h = jnp.zeros((B, H), jnp.float32)
    c = jnp.zeros((B, H), jnp.float32)

    # Fully unrolled recurrence (S is small & static): static slices of xg and
    # full scheduling visibility across steps; only h @ w_hh stays on the chain.
    for t in range(S):
        gates = xg[t * B:(t + 1) * B, :] + jnp.dot(
            h, w_hh, preferred_element_type=jnp.float32)              # (B, 4H)
        sg = jax.nn.sigmoid(gates)        # one EUP pass over all 4H lanes
        tg = jnp.tanh(gates)              # one EUP pass over all 4H lanes
        i_g = sg[:, 0 * H:1 * H]
        f_g = sg[:, 1 * H:2 * H]
        g_g = tg[:, 2 * H:3 * H]
        o_g = sg[:, 3 * H:4 * H]
        c = f_g * c + i_g * g_g
        h = o_g * jnp.tanh(c)

    # ---------------- head: relu -> dropout(identity, eval) -> Linear ---------
    # TODO(synk): nn.Dropout is identity in eval mode; training-mode RNG masking not implemented.
    h = jnp.maximum(h, 0.0)
    out_ref[...] = (jnp.dot(h, wfc_ref[...], preferred_element_type=jnp.float32)
                    + bfc_ref[...])


def conv_lstm_regression(x, params):
    """x: (B, S, Cin) batch-first, like the PyTorch module."""
    B, S, Cin = x.shape
    Cconv = params["w_conv"].shape[2]
    H = params["w_hh"].shape[0]
    O = params["w_fc"].shape[1]

    # Free layout plumbing in the wrapper:
    #   * time-major + row-flattened input (S*B, Cin)  (no in-kernel reshape)
    #   * conv taps fused into a single (Cin, 3*Cconv) matrix
    x_flat = jnp.transpose(x, (1, 0, 2)).reshape(S * B, Cin)
    w_conv_fused = jnp.concatenate(
        [params["w_conv"][0], params["w_conv"][1], params["w_conv"][2]], axis=1)

    vmem = pl.BlockSpec(memory_space=pltpu.MemorySpace.VMEM)
    kernel = functools.partial(_conv_lstm_kernel, seq_len=S, batch=B)
    return pl.pallas_call(
        kernel,
        out_shape=jax.ShapeDtypeStruct((B, O), jnp.float32),
        in_specs=[vmem] * 8,
        out_specs=vmem,
        scratch_shapes=[pltpu.VMEM((S * B, Cconv), jnp.float32)],
    )(x_flat, w_conv_fused, params["b_conv"],
      params["w_ih"], params["w_hh"], params["b_lstm"],
      params["w_fc"], params["b_fc"])


# ----------------------------- pure-JAX reference ----------------------------
def reference_forward(x, params):
    H = params["w_hh"].shape[0]

    # Conv1d k=3 pad=1 over the sequence axis + ReLU.
    xp = jnp.pad(x, ((0, 0), (1, 1), (0, 0)))
    conv = (jnp.einsum("bsc,co->bso", xp[:, :-2, :], params["w_conv"][0])
            + jnp.einsum("bsc,co->bso", xp[:, 1:-1, :], params["w_conv"][1])
            + jnp.einsum("bsc,co->bso", xp[:, 2:, :], params["w_conv"][2])
            + params["b_conv"][0])
    conv = jnp.maximum(conv, 0.0)

    def step(carry, x_t):
        h, c = carry
        gates = x_t @ params["w_ih"] + h @ params["w_hh"] + params["b_lstm"][0]
        i = jax.nn.sigmoid(gates[:, 0 * H:1 * H])
        f = jax.nn.sigmoid(gates[:, 1 * H:2 * H])
        g = jnp.tanh(gates[:, 2 * H:3 * H])
        o = jax.nn.sigmoid(gates[:, 3 * H:4 * H])
        c = f * c + i * g
        h = o * jnp.tanh(c)
        return (h, c), None

    B = x.shape[0]
    h0 = jnp.zeros((B, H), jnp.float32)
    (h, _), _ = lax.scan(step, (h0, h0), jnp.transpose(conv, (1, 0, 2)))
    h = jnp.maximum(h, 0.0)
    return h @ params["w_fc"] + params["b_fc"][0]


if __name__ == "__main__":
    # Small shapes consistent with the module: batch=2, seq=8, input_dim=4,
    # conv_hidden_dim=32, lstm_hidden_dim=32, output_dim=4.
    B, S, Cin, Cconv, H, O = 2, 8, 4, 32, 32, 4

    key = jax.random.PRNGKey(0)
    ks = jax.random.split(key, 9)
    scale = 0.1
    params = {
        # PyTorch conv weight is (Cout, Cin, K); stored here as (K, Cin, Cout).
        "w_conv": scale * jax.random.normal(ks[0], (3, Cin, Cconv), jnp.float32),
        "b_conv": scale * jax.random.normal(ks[1], (1, Cconv), jnp.float32),
        # PyTorch LSTM weight_ih_l0 is (4H, Cconv); stored here as (Cconv, 4H), gate order i|f|g|o.
        "w_ih": scale * jax.random.normal(ks[2], (Cconv, 4 * H), jnp.float32),
        "w_hh": scale * jax.random.normal(ks[3], (H, 4 * H), jnp.float32),
        # b_ih + b_hh combined.
        "b_lstm": scale * jax.random.normal(ks[4], (1, 4 * H), jnp.float32),
        # PyTorch fc weight is (O, H); stored here as (H, O).
        "w_fc": scale * jax.random.normal(ks[5], (H, O), jnp.float32),
        "b_fc": scale * jax.random.normal(ks[6], (1, O), jnp.float32),
    }

    x = jax.random.normal(ks[7], (B, S, Cin), jnp.float32)

    out = jax.block_until_ready(conv_lstm_regression(x, params))
    ref = jax.block_until_ready(reference_forward(x, params))

    assert out.shape == (B, O), out.shape
    assert jnp.allclose(out, ref, atol=1e-4, rtol=1e-4), (out, ref)
    print("KERNEL_OK")
</pallas_src>

<mosaic_0001>
module attributes {stable_mosaic.version = 11 : i64} {
  func.func @_conv_lstm_kernel(%arg0: memref<16x4xf32, #tpu.memory_space<vmem>>, %arg1: memref<4x96xf32, #tpu.memory_space<vmem>>, %arg2: memref<1x32xf32, #tpu.memory_space<vmem>>, %arg3: memref<32x128xf32, #tpu.memory_space<vmem>>, %arg4: memref<32x128xf32, #tpu.memory_space<vmem>>, %arg5: memref<1x128xf32, #tpu.memory_space<vmem>>, %arg6: memref<32x4xf32, #tpu.memory_space<vmem>>, %arg7: memref<1x4xf32, #tpu.memory_space<vmem>>, %arg8: memref<2x4xf32, #tpu.memory_space<vmem>>, %arg9: memref<16x32xf32, #tpu.memory_space<vmem>>) attributes {dimension_semantics = [], scalar_prefetch = 0 : i64, scratch_operands = 1 : i64, tpu.core_type = #tpu.core_type<tc>} {
    %c0 = arith.constant 0 : index
    %c0_0 = arith.constant 0 : index
    %0 = vector.load %arg0[%c0, %c0_0] : memref<16x4xf32, #tpu.memory_space<vmem>>, vector<16x4xf32>
    %c0_1 = arith.constant 0 : index
    %c0_2 = arith.constant 0 : index
    %1 = vector.load %arg1[%c0_1, %c0_2] : memref<4x96xf32, #tpu.memory_space<vmem>>, vector<4x96xf32>
    %cst = arith.constant dense<0.000000e+00> : vector<16x96xf32>
    %2 = tpu.matmul %0, %1, %cst {dimension_numbers = #tpu.dot_dimension_numbers<[1], [0], [0], [1], [0, 0, 1, 1], [], []>} : vector<16x4xf32>, vector<4x96xf32>, vector<16x96xf32> -> vector<16x96xf32>
    %3 = vector.extract_strided_slice %2 {offsets = [0, 0], sizes = [16, 32], strides = [1, 1]} : vector<16x96xf32> to vector<16x32xf32>
    %4 = vector.extract_strided_slice %2 {offsets = [0, 32], sizes = [16, 32], strides = [1, 1]} : vector<16x96xf32> to vector<16x32xf32>
    %5 = vector.extract_strided_slice %2 {offsets = [0, 64], sizes = [16, 32], strides = [1, 1]} : vector<16x96xf32> to vector<16x32xf32>
    %c0_3 = arith.constant 0 : index
    %c0_4 = arith.constant 0 : index
    %6 = vector.load %arg2[%c0_3, %c0_4] : memref<1x32xf32, #tpu.memory_space<vmem>>, vector<1x32xf32>
    %7 = vector.broadcast %6 : vector<1x32xf32> to vector<16x32xf32>
    %8 = arith.addf %4, %7 : vector<16x32xf32>
    %c0_5 = arith.constant 0 : index
    %c0_6 = arith.constant 0 : index
    %9 = vector.load %arg9[%c0_5, %c0_6] : memref<16x32xf32, #tpu.memory_space<vmem>>, vector<16x32xf32>
    tpu.vector_store %arg9[%c0_5, %c0_6], %8 {strides = array<i32>} : memref<16x32xf32, #tpu.memory_space<vmem>>, vector<16x32xf32>,
    %c2 = arith.constant 2 : index
    %c0_7 = arith.constant 0 : index
    %10 = vector.load %arg9[%c2, %c0_7] : memref<16x32xf32, #tpu.memory_space<vmem>>, vector<14x32xf32>
    %11 = vector.extract_strided_slice %3 {offsets = [0, 0], sizes = [14, 32], strides = [1, 1]} : vector<16x32xf32> to vector<14x32xf32>
    %12 = arith.addf %10, %11 : vector<14x32xf32>
    %c2_8 = arith.constant 2 : index
    %c0_9 = arith.constant 0 : index
    %13 = vector.load %arg9[%c2_8, %c0_9] : memref<16x32xf32, #tpu.memory_space<vmem>>, vector<14x32xf32>
    tpu.vector_store %arg9[%c2_8, %c0_9], %12 {strides = array<i32>} : memref<16x32xf32, #tpu.memory_space<vmem>>, vector<14x32xf32>,
    %c0_10 = arith.constant 0 : index
    %c0_11 = arith.constant 0 : index
    %14 = vector.load %arg9[%c0_10, %c0_11] : memref<16x32xf32, #tpu.memory_space<vmem>>, vector<14x32xf32>
    %15 = vector.extract_strided_slice %5 {offsets = [2, 0], sizes = [14, 32], strides = [1, 1]} : vector<16x32xf32> to vector<14x32xf32>
    %16 = arith.addf %14, %15 : vector<14x32xf32>
    %c0_12 = arith.constant 0 : index
    %c0_13 = arith.constant 0 : index
    %17 = vector.load %arg9[%c0_12, %c0_13] : memref<16x32xf32, #tpu.memory_space<vmem>>, vector<14x32xf32>
    tpu.vector_store %arg9[%c0_12, %c0_13], %16 {strides = array<i32>} : memref<16x32xf32, #tpu.memory_space<vmem>>, vector<14x32xf32>,
    %c0_14 = arith.constant 0 : index
    %c0_15 = arith.constant 0 : index
    %18 = vector.load %arg9[%c0_14, %c0_15] : memref<16x32xf32, #tpu.memory_space<vmem>>, vector<16x32xf32>
    %cst_16 = arith.constant 0.000000e+00 : f32
    %19 = vector.broadcast %cst_16 : f32 to vector<16x32xf32>
    %20 = arith.maximumf %18, %19 : vector<16x32xf32>
    %c0_17 = arith.constant 0 : index
    %c0_18 = arith.constant 0 : index
    %21 = vector.load %arg3[%c0_17, %c0_18] : memref<32x128xf32, #tpu.memory_space<vmem>>, vector<32x128xf32>
    %cst_19 = arith.constant dense<0.000000e+00> : vector<16x128xf32>
    %22 = tpu.matmul %20, %21, %cst_19 {dimension_numbers = #tpu.dot_dimension_numbers<[1], [0], [0], [1], [0, 0, 1, 1], [], []>} : vector<16x32xf32>, vector<32x128xf32>, vector<16x128xf32> -> vector<16x128xf32>
    %c0_20 = arith.constant 0 : index
    %c0_21 = arith.constant 0 : index
    %23 = vector.load %arg5[%c0_20, %c0_21] : memref<1x128xf32, #tpu.memory_space<vmem>>, vector<1x128xf32>
    %24 = vector.broadcast %23 : vector<1x128xf32> to vector<16x128xf32>
    %25 = arith.addf %22, %24 : vector<16x128xf32>
    %c0_22 = arith.constant 0 : index
    %c0_23 = arith.constant 0 : index
    %26 = vector.load %arg4[%c0_22, %c0_23] : memref<32x128xf32, #tpu.memory_space<vmem>>, vector<32x128xf32>
    %cst_24 = arith.constant 0.000000e+00 : f32
    %27 = vector.broadcast %cst_24 : f32 to vector<2x32xf32>
    %cst_25 = arith.constant 0.000000e+00 : f32
    %28 = vector.broadcast %cst_25 : f32 to vector<2x32xf32>
    %29 = vector.extract_strided_slice %25 {offsets = [0, 0], sizes = [2, 128], strides = [1, 1]} : vector<16x128xf32> to vector<2x128xf32>
    %cst_26 = arith.constant dense<0.000000e+00> : vector<2x128xf32>
    %30 = tpu.matmul %27, %26, %cst_26 {dimension_numbers = #tpu.dot_dimension_numbers<[1], [0], [0], [1], [0, 0, 1, 1], [], []>} : vector<2x32xf32>, vector<32x128xf32>, vector<2x128xf32> -> vector<2x128xf32>
    %31 = arith.addf %29, %30 : vector<2x128xf32>
    %32 = arith.negf %31 : vector<2x128xf32>
    %33 = math.exp %32 : vector<2x128xf32>
    %cst_27 = arith.constant 1.000000e+00 : f32
    %34 = vector.broadcast %cst_27 : f32 to vector<2x128xf32>
    %35 = arith.addf %34, %33 : vector<2x128xf32>
    %36 = arith.divf %34, %35 : vector<2x128xf32>
    %37 = math.tanh %31 : vector<2x128xf32>
    %38 = vector.extract_strided_slice %36 {offsets = [0, 0], sizes = [2, 32], strides = [1, 1]} : vector<2x128xf32> to vector<2x32xf32>
    %39 = vector.extract_strided_slice %36 {offsets = [0, 32], sizes = [2, 32], strides = [1, 1]} : vector<2x128xf32> to vector<2x32xf32>
    %40 = vector.extract_strided_slice %37 {offsets = [0, 64], sizes = [2, 32], strides = [1, 1]} : vector<2x128xf32> to vector<2x32xf32>
    %41 = vector.extract_strided_slice %36 {offsets = [0, 96], sizes = [2, 32], strides = [1, 1]} : vector<2x128xf32> to vector<2x32xf32>
    %42 = arith.mulf %39, %28 : vector<2x32xf32>
    %43 = arith.mulf %38, %40 : vector<2x32xf32>
    %44 = arith.addf %42, %43 : vector<2x32xf32>
    %45 = math.tanh %44 : vector<2x32xf32>
    %46 = arith.mulf %41, %45 : vector<2x32xf32>
    %47 = vector.extract_strided_slice %25 {offsets = [2, 0], sizes = [2, 128], strides = [1, 1]} : vector<16x128xf32> to vector<2x128xf32>
    %cst_28 = arith.constant dense<0.000000e+00> : vector<2x128xf32>
    %48 = tpu.matmul %46, %26, %cst_28 {dimension_numbers = #tpu.dot_dimension_numbers<[1], [0], [0], [1], [0, 0, 1, 1], [], []>} : vector<2x32xf32>, vector<32x128xf32>, vector<2x128xf32> -> vector<2x128xf32>
    %49 = arith.addf %47, %48 : vector<2x128xf32>
    %50 = arith.negf %49 : vector<2x128xf32>
    %51 = math.exp %50 : vector<2x128xf32>
    %cst_29 = arith.constant 1.000000e+00 : f32
    %52 = vector.broadcast %cst_29 : f32 to vector<2x128xf32>
    %53 = arith.addf %52, %51 : vector<2x128xf32>
    %54 = arith.divf %52, %53 : vector<2x128xf32>
    %55 = math.tanh %49 : vector<2x128xf32>
    %56 = vector.extract_strided_slice %54 {offsets = [0, 0], sizes = [2, 32], strides = [1, 1]} : vector<2x128xf32> to vector<2x32xf32>
    %57 = vector.extract_strided_slice %54 {offsets = [0, 32], sizes = [2, 32], strides = [1, 1]} : vector<2x128xf32> to vector<2x32xf32>
    %58 = vector.extract_strided_slice %55 {offsets = [0, 64], sizes = [2, 32], strides = [1, 1]} : vector<2x128xf32> to vector<2x32xf32>
    %59 = vector.extract_strided_slice %54 {offsets = [0, 96], sizes = [2, 32], strides = [1, 1]} : vector<2x128xf32> to vector<2x32xf32>
    %60 = arith.mulf %57, %44 : vector<2x32xf32>
    %61 = arith.mulf %56, %58 : vector<2x32xf32>
    %62 = arith.addf %60, %61 : vector<2x32xf32>
    %63 = math.tanh %62 : vector<2x32xf32>
    %64 = arith.mulf %59, %63 : vector<2x32xf32>
    %65 = vector.extract_strided_slice %25 {offsets = [4, 0], sizes = [2, 128], strides = [1, 1]} : vector<16x128xf32> to vector<2x128xf32>
    %cst_30 = arith.constant dense<0.000000e+00> : vector<2x128xf32>
    %66 = tpu.matmul %64, %26, %cst_30 {dimension_numbers = #tpu.dot_dimension_numbers<[1], [0], [0], [1], [0, 0, 1, 1], [], []>} : vector<2x32xf32>, vector<32x128xf32>, vector<2x128xf32> -> vector<2x128xf32>
    %67 = arith.addf %65, %66 : vector<2x128xf32>
    %68 = arith.negf %67 : vector<2x128xf32>
    %69 = math.exp %68 : vector<2x128xf32>
    %cst_31 = arith.constant 1.000000e+00 : f32
    %70 = vector.broadcast %cst_31 : f32 to vector<2x128xf32>
    %71 = arith.addf %70, %69 : vector<2x128xf32>
    %72 = arith.divf %70, %71 : vector<2x128xf32>
    %73 = math.tanh %67 : vector<2x128xf32>
    %74 = vector.extract_strided_slice %72 {offsets = [0, 0], sizes = [2, 32], strides = [1, 1]} : vector<2x128xf32> to vector<2x32xf32>
    %75 = vector.extract_strided_slice %72 {offsets = [0, 32], sizes = [2, 32], strides = [1, 1]} : vector<2x128xf32> to vector<2x32xf32>
    %76 = vector.extract_strided_slice %73 {offsets = [0, 64], sizes = [2, 32], strides = [1, 1]} : vector<2x128xf32> to vector<2x32xf32>
    %77 = vector.extract_strided_slice %72 {offsets = [0, 96], sizes = [2, 32], strides = [1, 1]} : vector<2x128xf32> to vector<2x32xf32>
    %78 = arith.mulf %75, %62 : vector<2x32xf32>
    %79 = arith.mulf %74, %76 : vector<2x32xf32>
    %80 = arith.addf %78, %79 : vector<2x32xf32>
    %81 = math.tanh %80 : vector<2x32xf32>
    %82 = arith.mulf %77, %81 : vector<2x32xf32>
    %83 = vector.extract_strided_slice %25 {offsets = [6, 0], sizes = [2, 128], strides = [1, 1]} : vector<16x128xf32> to vector<2x128xf32>
    %cst_32 = arith.constant dense<0.000000e+00> : vector<2x128xf32>
    %84 = tpu.matmul %82, %26, %cst_32 {dimension_numbers = #tpu.dot_dimension_numbers<[1], [0], [0], [1], [0, 0, 1, 1], [], []>} : vector<2x32xf32>, vector<32x128xf32>, vector<2x128xf32> -> vector<2x128xf32>
    %85 = arith.addf %83, %84 : vector<2x128xf32>
    %86 = arith.negf %85 : vector<2x128xf32>
    %87 = math.exp %86 : vector<2x128xf32>
    %cst_33 = arith.constant 1.000000e+00 : f32
    %88 = vector.broadcast %cst_33 : f32 to vector<2x128xf32>
    %89 = arith.addf %88, %87 : vector<2x128xf32>
    %90 = arith.divf %88, %89 : vector<2x128xf32>
    %91 = math.tanh %85 : vector<2x128xf32>
    %92 = vector.extract_strided_slice %90 {offsets = [0, 0], sizes = [2, 32], strides = [1, 1]} : vector<2x128xf32> to vector<2x32xf32>
    %93 = vector.extract_strided_slice %90 {offsets = [0, 32], sizes = [2, 32], strides = [1, 1]} : vector<2x128xf32> to vector<2x32xf32>
    %94 = vector.extract_strided_slice %91 {offsets = [0, 64], sizes = [2, 32], strides = [1, 1]} : vector<2x128xf32> to vector<2x32xf32>
    %95 = vector.extract_strided_slice %90 {offsets = [0, 96], sizes = [2, 32], strides = [1, 1]} : vector<2x128xf32> to vector<2x32xf32>
    %96 = arith.mulf %93, %80 : vector<2x32xf32>
    %97 = arith.mulf %92, %94 : vector<2x32xf32>
    %98 = arith.addf %96, %97 : vector<2x32xf32>
    %99 = math.tanh %98 : vector<2x32xf32>
    %100 = arith.mulf %95, %99 : vector<2x32xf32>
    %101 = vector.extract_strided_slice %25 {offsets = [8, 0], sizes = [2, 128], strides = [1, 1]} : vector<16x128xf32> to vector<2x128xf32>
    %cst_34 = arith.constant dense<0.000000e+00> : vector<2x128xf32>
    %102 = tpu.matmul %100, %26, %cst_34 {dimension_numbers = #tpu.dot_dimension_numbers<[1], [0], [0], [1], [0, 0, 1, 1], [], []>} : vector<2x32xf32>, vector<32x128xf32>, vector<2x128xf32> -> vector<2x128xf32>
    %103 = arith.addf %101, %102 : vector<2x128xf32>
    %104 = arith.negf %103 : vector<2x128xf32>
    %105 = math.exp %104 : vector<2x128xf32>
    %cst_35 = arith.constant 1.000000e+00 : f32
    %106 = vector.broadcast %cst_35 : f32 to vector<2x128xf32>
    %107 = arith.addf %106, %105 : vector<2x128xf32>
    %108 = arith.divf %106, %107 : vector<2x128xf32>
    %109 = math.tanh %103 : vector<2x128xf32>
    %110 = vector.extract_strided_slice %108 {offsets = [0, 0], sizes = [2, 32], strides = [1, 1]} : vector<2x128xf32> to vector<2x32xf32>
    %111 = vector.extract_strided_slice %108 {offsets = [0, 32], sizes = [2, 32], strides = [1, 1]} : vector<2x128xf32> to vector<2x32xf32>
    %112 = vector.extract_strided_slice %109 {offsets = [0, 64], sizes = [2, 32], strides = [1, 1]} : vector<2x128xf32> to vector<2x32xf32>
    %113 = vector.extract_strided_slice %108 {offsets = [0, 96], sizes = [2, 32], strides = [1, 1]} : vector<2x128xf32> to vector<2x32xf32>
    %114 = arith.mulf %111, %98 : vector<2x32xf32>
    %115 = arith.mulf %110, %112 : vector<2x32xf32>
    %116 = arith.addf %114, %115 : vector<2x32xf32>
    %117 = math.tanh %116 : vector<2x32xf32>
    %118 = arith.mulf %113, %117 : vector<2x32xf32>
    %119 = vector.extract_strided_slice %25 {offsets = [10, 0], sizes = [2, 128], strides = [1, 1]} : vector<16x128xf32> to vector<2x128xf32>
    %cst_36 = arith.constant dense<0.000000e+00> : vector<2x128xf32>
    %120 = tpu.matmul %118, %26, %cst_36 {dimension_numbers = #tpu.dot_dimension_numbers<[1], [0], [0], [1], [0, 0, 1, 1], [], []>} : vector<2x32xf32>, vector<32x128xf32>, vector<2x128xf32> -> vector<2x128xf32>
    %121 = arith.addf %119, %120 : vector<2x128xf32>
    %122 = arith.negf %121 : vector<2x128xf32>
    %123 = math.exp %122 : vector<2x128xf32>
    %cst_37 = arith.constant 1.000000e+00 : f32
    %124 = vector.broadcast %cst_37 : f32 to vector<2x128xf32>
    %125 = arith.addf %124, %123 : vector<2x128xf32>
    %126 = arith.divf %124, %125 : vector<2x128xf32>
    %127 = math.tanh %121 : vector<2x128xf32>
    %128 = vector.extract_strided_slice %126 {offsets = [0, 0], sizes = [2, 32], strides = [1, 1]} : vector<2x128xf32> to vector<2x32xf32>
    %129 = vector.extract_strided_slice %126 {offsets = [0, 32], sizes = [2, 32], strides = [1, 1]} : vector<2x128xf32> to vector<2x32xf32>
    %130 = vector.extract_strided_slice %127 {offsets = [0, 64], sizes = [2, 32], strides = [1, 1]} : vector<2x128xf32> to vector<2x32xf32>
    %131 = vector.extract_strided_slice %126 {offsets = [0, 96], sizes = [2, 32], strides = [1, 1]} : vector<2x128xf32> to vector<2x32xf32>
    %132 = arith.mulf %129, %116 : vector<2x32xf32>
    %133 = arith.mulf %128, %130 : vector<2x32xf32>
    %134 = arith.addf %132, %133 : vector<2x32xf32>
    %135 = math.tanh %134 : vector<2x32xf32>
    %136 = arith.mulf %131, %135 : vector<2x32xf32>
    %137 = vector.extract_strided_slice %25 {offsets = [12, 0], sizes = [2, 128], strides = [1, 1]} : vector<16x128xf32> to vector<2x128xf32>
    %cst_38 = arith.constant dense<0.000000e+00> : vector<2x128xf32>
    %138 = tpu.matmul %136, %26, %cst_38 {dimension_numbers = #tpu.dot_dimension_numbers<[1], [0], [0], [1], [0, 0, 1, 1], [], []>} : vector<2x32xf32>, vector<32x128xf32>, vector<2x128xf32> -> vector<2x128xf32>
    %139 = arith.addf %137, %138 : vector<2x128xf32>
    %140 = arith.negf %139 : vector<2x128xf32>
    %141 = math.exp %140 : vector<2x128xf32>
    %cst_39 = arith.constant 1.000000e+00 : f32
    %142 = vector.broadcast %cst_39 : f32 to vector<2x128xf32>
    %143 = arith.addf %142, %141 : vector<2x128xf32>
    %144 = arith.divf %142, %143 : vector<2x128xf32>
    %145 = math.tanh %139 : vector<2x128xf32>
    %146 = vector.extract_strided_slice %144 {offsets = [0, 0], sizes = [2, 32], strides = [1, 1]} : vector<2x128xf32> to vector<2x32xf32>
    %147 = vector.extract_strided_slice %144 {offsets = [0, 32], sizes = [2, 32], strides = [1, 1]} : vector<2x128xf32> to vector<2x32xf32>
    %148 = vector.extract_strided_slice %145 {offsets = [0, 64], sizes = [2, 32], strides = [1, 1]} : vector<2x128xf32> to vector<2x32xf32>
    %149 = vector.extract_strided_slice %144 {offsets = [0, 96], sizes = [2, 32], strides = [1, 1]} : vector<2x128xf32> to vector<2x32xf32>
    %150 = arith.mulf %147, %134 : vector<2x32xf32>
    %151 = arith.mulf %146, %148 : vector<2x32xf32>
    %152 = arith.addf %150, %151 : vector<2x32xf32>
    %153 = math.tanh %152 : vector<2x32xf32>
    %154 = arith.mulf %149, %153 : vector<2x32xf32>
    %155 = vector.extract_strided_slice %25 {offsets = [14, 0], sizes = [2, 128], strides = [1, 1]} : vector<16x128xf32> to vector<2x128xf32>
    %cst_40 = arith.constant dense<0.000000e+00> : vector<2x128xf32>
    %156 = tpu.matmul %154, %26, %cst_40 {dimension_numbers = #tpu.dot_dimension_numbers<[1], [0], [0], [1], [0, 0, 1, 1], [], []>} : vector<2x32xf32>, vector<32x128xf32>, vector<2x128xf32> -> vector<2x128xf32>
    %157 = arith.addf %155, %156 : vector<2x128xf32>
    %158 = arith.negf %157 : vector<2x128xf32>
    %159 = math.exp %158 : vector<2x128xf32>
    %cst_41 = arith.constant 1.000000e+00 : f32
    %160 = vector.broadcast %cst_41 : f32 to vector<2x128xf32>
    %161 = arith.addf %160, %159 : vector<2x128xf32>
    %162 = arith.divf %160, %161 : vector<2x128xf32>
    %163 = math.tanh %157 : vector<2x128xf32>
    %164 = vector.extract_strided_slice %162 {offsets = [0, 0], sizes = [2, 32], strides = [1, 1]} : vector<2x128xf32> to vector<2x32xf32>
    %165 = vector.extract_strided_slice %162 {offsets = [0, 32], sizes = [2, 32], strides = [1, 1]} : vector<2x128xf32> to vector<2x32xf32>
    %166 = vector.extract_strided_slice %163 {offsets = [0, 64], sizes = [2, 32], strides = [1, 1]} : vector<2x128xf32> to vector<2x32xf32>
    %167 = vector.extract_strided_slice %162 {offsets = [0, 96], sizes = [2, 32], strides = [1, 1]} : vector<2x128xf32> to vector<2x32xf32>
    %168 = arith.mulf %165, %152 : vector<2x32xf32>
    %169 = arith.mulf %164, %166 : vector<2x32xf32>
    %170 = arith.addf %168, %169 : vector<2x32xf32>
    %171 = math.tanh %170 : vector<2x32xf32>
    %172 = arith.mulf %167, %171 : vector<2x32xf32>
    %cst_42 = arith.constant 0.000000e+00 : f32
    %173 = vector.broadcast %cst_42 : f32 to vector<2x32xf32>
    %174 = arith.maximumf %172, %173 : vector<2x32xf32>
    %c0_43 = arith.constant 0 : index
    %c0_44 = arith.constant 0 : index
    %175 = vector.load %arg6[%c0_43, %c0_44] : memref<32x4xf32, #tpu.memory_space<vmem>>, vector<32x4xf32>
    %cst_45 = arith.constant dense<0.000000e+00> : vector<2x4xf32>
    %176 = tpu.matmul %174, %175, %cst_45 {dimension_numbers = #tpu.dot_dimension_numbers<[1], [0], [0], [1], [0, 0, 1, 1], [], []>} : vector<2x32xf32>, vector<32x4xf32>, vector<2x4xf32> -> vector<2x4xf32>
    %c0_46 = arith.constant 0 : index
    %c0_47 = arith.constant 0 : index
    %177 = vector.load %arg7[%c0_46, %c0_47] : memref<1x4xf32, #tpu.memory_space<vmem>>, vector<1x4xf32>
    %178 = vector.broadcast %177 : vector<1x4xf32> to vector<2x4xf32>
    %179 = arith.addf %176, %178 : vector<2x4xf32>
    %c0_48 = arith.constant 0 : index
    %c0_49 = arith.constant 0 : index
    %180 = vector.load %arg8[%c0_48, %c0_49] : memref<2x4xf32, #tpu.memory_space<vmem>>, vector<2x4xf32>
    tpu.vector_store %arg8[%c0_48, %c0_49], %179 {strides = array<i32>} : memref<2x4xf32, #tpu.memory_space<vmem>>, vector<2x4xf32>,
    return
  }
}

</mosaic_0001>

<llo_original>
// kernel: tpu_custom_call.1
$region0: #{tpu_custom_call.1}
  #allocation0 [shape = 'u32[]', space=smem, size = 0x4, offset = 0x4, fixed_abs, tag = 'smem constant byte address 0x4 - core index']
  #allocation1 [shape = 'u32[72,128]{1,0:T(1,128)}', space=vmem, size = 0x9000, scoped, tag = 'internal scratch']
  #allocation2 [shape = 'f32[16,32]{1,0:T(8,128)}', space=vmem, size = 0x2000, scoped, tag = 'scratch operand']
  %s0 = inlined_call_operand.vmem [shape: f32[16,4], index: 0, kind: input, shape index: {}]
  %s1 = inlined_call_operand.vmem [shape: f32[4,96], index: 1, kind: input, shape index: {}]
  %s2 = inlined_call_operand.vmem [shape: f32[1,32], index: 2, kind: input, shape index: {}]
  %s3 = inlined_call_operand.vmem [shape: f32[32,128], index: 3, kind: input, shape index: {}]
  %s4 = inlined_call_operand.hbm [shape: f32[32,128], index: 4, kind: input, shape index: {}]
  %s5 = inlined_call_operand.vmem [shape: f32[1,128], index: 5, kind: input, shape index: {}]
  %s6 = inlined_call_operand.vmem [shape: f32[32,4], index: 6, kind: input, shape index: {}]
  %s7 = inlined_call_operand.vmem [shape: f32[1,4], index: 7, kind: input, shape index: {}]
  %s8 = inlined_call_operand.hbm [shape: f32[2,4], index: 8, kind: output, shape index: {}]
  %s9 = sld [smem:[#allocation0]]
  $region46: #{tpu_custom_call.1} parent=0
    _
  %s11 = ssub.s32 1, %s9
  %s12 = scalar_select 0, %s11, %s9
  $region1: #{tpu_custom_call.1} parent=0
    #allocation3 [shape = 'u8[16384]{0}', space=vmem, size = 0x4000, scoped, tag = 'input window, operand 4, single buffered']
    #allocation4 [shape = 's32[1]{0}', space=sflag, size = 0x4, scoped, tag = 'scoped memory for tpu_custom_call.1']
    #allocation5 [shape = 's32[1]{0}', space=sflag, size = 0x4, scoped, tag = 'scoped memory for tpu_custom_call.1']
    #allocation6 [shape = 'u8[1024]{0}', space=vmem, size = 0x400, scoped, tag = 'output window, operand 0, single buffered']
    %13 = vsyncpa [#allocation4], 0
    %14 = vsyncpa [#allocation5], 0
    // Predicated region
    $region2: #{tpu_custom_call.1} parent=1 // pred_check
      _
    $region3: #{tpu_custom_call.1} parent=1 // pred_check_branch
      %16 = sbr.rel (0) target = $region5
    $region4: #{tpu_custom_call.1} parent=1 // pred_region
      _
    $region5: #{tpu_custom_call.1} parent=1 // pred_fallthru
      _
    // Predicated region
    $region6: #{tpu_custom_call.1} parent=1 // pred_check
      _
    $region7: #{tpu_custom_call.1} parent=1 // pred_check_branch
      %18 = sbr.rel (0) target = $region9
    $region8: #{tpu_custom_call.1} parent=1 // pred_region
      _
    $region9: #{tpu_custom_call.1} parent=1 // pred_fallthru
      _
    // Predicated region
    $region10: #{tpu_custom_call.1} parent=1 // pred_check
      _
    $region11: #{tpu_custom_call.1} parent=1 // pred_check_branch
      %20 = sbr.rel (0) target = $region13
    $region12: #{tpu_custom_call.1} parent=1 // pred_region
      _
    $region13: #{tpu_custom_call.1} parent=1 // pred_fallthru
      _
    // Predicated region
    $region14: #{tpu_custom_call.1} parent=1 // pred_check
      _
    $region15: #{tpu_custom_call.1} parent=1 // pred_check_branch
      %22 = sbr.rel (0) target = $region17
    $region16: #{tpu_custom_call.1} parent=1 // pred_region
      _
    $region17: #{tpu_custom_call.1} parent=1 // pred_fallthru
      _
    // Predicated region
    $region18: #{tpu_custom_call.1} parent=1 // pred_check
      _
    $region19: #{tpu_custom_call.1} parent=1 // pred_check_branch
      %24 = sbr.rel (0) target = $region21
    $region20: #{tpu_custom_call.1} parent=1 // pred_region
      %26 = vsyncadd [#allocation4], 0
      %s27 = sshll.u32 %s4, 4
      %s28 = int_to_ptr.hbm [resolvable:$true] %s27
      %s29 = sshll.u32 [#allocation3], 4
      %s30 = int_to_ptr.vmem [resolvable:$true] %s29
      %35 = dma.hbm_to_vmem [thread:$0]  %s28, 512, %s30, [#allocation4], 128, 128, 8
    $region21: #{tpu_custom_call.1} parent=1 // pred_fallthru
      _
    // Predicated region
    $region22: #{tpu_custom_call.1} parent=1 // pred_check
      _
    $region23: #{tpu_custom_call.1} parent=1 // pred_check_branch
      %37 = sbr.rel (0) target = $region25
    $region24: #{tpu_custom_call.1} parent=1 // pred_region
      _
    $region25: #{tpu_custom_call.1} parent=1 // pred_fallthru
      _
    // Predicated region
    $region26: #{tpu_custom_call.1} parent=1 // pred_check
      _
    $region27: #{tpu_custom_call.1} parent=1 // pred_check_branch
      %39 = sbr.rel (0) target = $region29
    $region28: #{tpu_custom_call.1} parent=1 // pred_region
      _
    $region29: #{tpu_custom_call.1} parent=1 // pred_fallthru
      _
    // Predicated region
    $region30: #{tpu_custom_call.1} parent=1 // pred_check
      _
    $region31: #{tpu_custom_call.1} parent=1 // pred_check_branch
      %41 = sbr.rel (0) target = $region33
    $region32: #{tpu_custom_call.1} parent=1 // pred_region
      _
    $region33: #{tpu_custom_call.1} parent=1 // pred_fallthru
      _
    // Predicated region
    $region34: #{tpu_custom_call.1} parent=1 // pred_check
      _
    $region35: #{tpu_custom_call.1} parent=1 // pred_check_branch
      %43 = sbr.rel (0) target = $region37
    $region36: #{tpu_custom_call.1} parent=1 // pred_region
      %45 = dma.done [#allocation4], 512
    $region37: #{tpu_custom_call.1} parent=1 // pred_fallthru
      _
    %v46 = vld [vmem:[%s0] sm:$0xff]
    %v47 = vld [vmem:[%s0 + $0x8] sm:$0xff]
    %v48 = vld [vmem:[%s1] sm:$0xf]
    %vm49 = vcmask 31744
    %v51 = vsel %vm49, %v46, 0
    %v54 = vsel %vm49, %v47, 0
    %vm56 = vcmask 1043456
    %v58 = vsel %vm56, %v48, 0
    %60 = vmatpush.msra.mxu0 0.0
    %61 = vmatpush.msra.mxu0 0.0
    %62 = vmatpush.msra.mxu0 0.0
    %63 = vmatpush.msra.mxu0 0.0
    %64 = vmatpush.msra.mxu0 0.0
    %65 = vmatpush.msra.mxu0 0.0
    %66 = vmatpush.msra.mxu0 0.0
    %67 = vmatpush.msra.mxu0 0.0
    %68 = vmatpush.msra.mxu0 0.0
    %69 = vmatpush.msra.mxu0 0.0
    %70 = vmatpush.msra.mxu0 0.0
    %71 = vmatpush.msra.mxu0 0.0
    %72 = vmatpush.msra.mxu0 0.0
    %73 = vmatpush.msra.mxu0 0.0
    %74 = vmatpush.msra.mxu0 0.0
    %75 = vmatpush.msra.mxu0 %v58
    %76 = vmatmul.f32.gmra.mxu0 %v51
    %v77 = vpop.f32.mrf.mxu0
    %v78 = vadd.f32 0.0, %v77
    %79 = vmatmul.f32.gmra.mxu0 %v54
    %v80 = vpop.f32.mrf.mxu0
    %v81 = vadd.f32 0.0, %v80
    %82 = vdwg.mxu0
    %v83 = vld [vmem:[%s2] sm:$0x1]
    %v85 = vperm.slane %v83, 0
    %86 = vrot.lane.b32.xlu0 %v85, 32
    %v87 = vpop.permute.xlu0 %86
    %v89 = vadd.f32 %v78, %v87
    %v90 = vadd.f32 %v81, %v87
    %93 = vrot.lane.b32.xlu0 %v89, 96
    %v94 = vpop.permute.xlu0 %93
    %95 = vrot.lane.b32.xlu0 %v90, 96
    %v96 = vpop.permute.xlu0 %95
    %vm99 = vcmask 261120
    %100 = vst.msk [vmem:[#allocation2] sm:$0xff] %vm99, %v94
    %101 = vst.msk [vmem:[#allocation2 + $0x8] sm:$0xff] %vm99, %v96
    %v102 = vld [vmem:[#allocation2 + $0x2] sm:$0xff]
    %v103 = vld [vmem:[#allocation2 + $0xa] sm:$0x3f]
    %v104 = vadd.f32 %v102, %v78
    %v105 = vadd.f32 %v103, %v81
    %106 = vst.msk [vmem:[#allocation2 + $0x2] sm:$0xff] %vm99, %v104
    %vm107 = vcmask 259072
    %108 = vst.msk [vmem:[#allocation2 + $0xa] sm:$0x3f] %vm107, %v105
    %v109 = vld [vmem:[#allocation2] sm:$0xff]
    %v110 = vld [vmem:[#allocation2 + $0x8] sm:$0x3f]
    %vm113 = vcmask 1045504
    %v114 = vrot.slane %v78, 2
    %v115 = vrot.slane %v81, 2
    %v116 = vsel %vm113, %v114, %v115
    %117 = vrot.lane.b32.xlu0 %v116, 64
    %v118 = vpop.permute.xlu0 %117
    %119 = vrot.lane.b32.xlu0 %v115, 64
    %v120 = vpop.permute.xlu0 %119
    %v123 = vadd.f32 %v109, %v118
    %v124 = vadd.f32 %v110, %v120
    %125 = vst.msk [vmem:[#allocation2] sm:$0xff] %vm99, %v123
    %126 = vst.msk [vmem:[#allocation2 + $0x8] sm:$0x3f] %vm107, %v124
    %v127 = vld [vmem:[#allocation2] sm:$0xff]
    %v128 = vld [vmem:[#allocation2 + $0x8] sm:$0xff]
    %v129 = vmax.f32 %v127, 0.0
    %v130 = vmax.f32 %v128, 0.0
    %v131 = vld [vmem:[%s3] sm:$0xff]
    %v132 = vld [vmem:[%s3 + $0x8] sm:$0xff]
    %v133 = vld [vmem:[%s3 + $0x10] sm:$0xff]
    %v134 = vld [vmem:[%s3 + $0x18] sm:$0xff]
    %v135 = vld [vmem:[%s5] sm:$0x1]
    %v137 = vperm.slane %v135, 0
    %v140 = vsel %vm99, %v129, 0
    %v143 = vsel %vm99, %v130, 0
    %145 = vmatpush.msra.mxu0 0.0
    %146 = vmatpush.msra.mxu0 0.0
    %147 = vmatpush.msra.mxu0 0.0
    %148 = vmatpush.msra.mxu0 0.0
    %149 = vmatpush.msra.mxu0 0.0
    %150 = vmatpush.msra.mxu0 0.0
    %151 = vmatpush.msra.mxu0 0.0
    %152 = vmatpush.msra.mxu0 0.0
    %153 = vmatpush.msra.mxu0 0.0
    %154 = vmatpush.msra.mxu0 0.0
    %155 = vmatpush.msra.mxu0 0.0
    %156 = vmatpush.msra.mxu0 0.0
    %157 = vmatpush.msra.mxu0 %v134
    %158 = vmatpush.msra.mxu0 %v133
    %159 = vmatpush.msra.mxu0 %v132
    %160 = vmatpush.msra.mxu0 %v131
    %161 = vmatmul.f32.gmra.mxu0 %v140
    %v162 = vpop.f32.mrf.mxu0
    %v163 = vadd.f32 %v137, %v162
    %164 = vmatmul.f32.gmra.mxu0 %v143
    %v165 = vpop.f32.mrf.mxu0
    %v166 = vadd.f32 %v137, %v165
    %167 = vdwg.mxu0
    %v168 = vld [vmem:[#allocation3] sm:$0xff]
    %v169 = vld [vmem:[#allocation3 + $0x8] sm:$0xff]
    %v170 = vld [vmem:[#allocation3 + $0x10] sm:$0xff]
    %v171 = vld [vmem:[#allocation3 + $0x18] sm:$0xff]
    %v173 = vsel %vm99, 0.0, 0
    %175 = vmatpush.msra.mxu0 0.0
    %176 = vmatpush.msra.mxu0 0.0
    %177 = vmatpush.msra.mxu0 0.0
    %178 = vmatpush.msra.mxu0 0.0
    %179 = vmatpush.msra.mxu0 0.0
    %180 = vmatpush.msra.mxu0 0.0
    %181 = vmatpush.msra.mxu0 0.0
    %182 = vmatpush.msra.mxu0 0.0
    %183 = vmatpush.msra.mxu0 0.0
    %184 = vmatpush.msra.mxu0 0.0
    %185 = vmatpush.msra.mxu0 0.0
    %186 = vmatpush.msra.mxu0 0.0
    %187 = vmatpush.msra.mxu0 %v171
    %188 = vmatpush.msra.mxu0 %v170
    %189 = vmatpush.msra.mxu0 %v169
    %190 = vmatpush.msra.mxu0 %v168
    %191 = vmatmul.f32.gmra.mxu0 %v173
    %v192 = vpop.f32.mrf.mxu0
    %v193 = vadd.f32 0.0, %v192
    %194 = vdwg.mxu0
    %v195 = vadd.f32 %v163, %v193
    %v196 = vxor.u32 %v195, 2147483648
    %v197 = vmul.f32 %v196, 1.442695
    %v198 = vpow.pop %v197
    %v199 = vadd.f32 %v198, 1.0
    %v200 = vrcp.pop %v199
    %v201 = vmul.f32 %v199, %v200
    %v202 = vsub.f32 1.0, %v201
    %v203 = vmul.f32 %v200, %v202
    %v204 = vadd.f32 %v200, %v203
    %vm205 = vweird.f32 %v199
    %vm206 = vweird.f32 %v200
    %vm207 = vmor %vm205, %vm206
    %v208 = vsel %vm207, %v200, %v204
    %v209 = vand.u32 2147483647, %v199
    %vm210 = vcmp.eq.f32.partialorder %v209, 8.507059e+37
    %v211 = vand.u32 %v199, 2147483648
    %v212 = vor.u32 1.1754944e-38, %v211
    %v213 = vsel %vm210, %v212, %v208
    %v214 = vmul.f32 1.0, %v213
    %v215 = vtanh.pop %v195
    %v216 = vmul.f32 %v214, 0.0
    %218 = vrot.lane.b32.xlu0 %v215, 64
    %v219 = vpop.permute.xlu0 %218
    %v221 = vmul.f32 %v214, %v219
    %223 = vrot.lane.b32.xlu0 %v221, 32
    %v224 = vpop.permute.xlu0 %223
    %v226 = vadd.f32 %v216, %v224
    %v227 = vtanh.pop %v226
    %229 = vrot.lane.b32.xlu0 %v227, 64
    %v230 = vpop.permute.xlu0 %229
    %v232 = vmul.f32 %v214, %v230
    %234 = vrot.lane.b32.xlu0 %v232, 32
    %v235 = vpop.permute.xlu0 %234
    %v236 = vsel %vm99, %v235, 0
    %238 = vmatpush.msra.mxu0 0.0
    %239 = vmatpush.msra.mxu0 0.0
    %240 = vmatpush.msra.mxu0 0.0
    %241 = vmatpush.msra.mxu0 0.0
    %242 = vmatpush.msra.mxu0 0.0
    %243 = vmatpush.msra.mxu0 0.0
    %244 = vmatpush.msra.mxu0 0.0
    %245 = vmatpush.msra.mxu0 0.0
    %246 = vmatpush.msra.mxu0 0.0
    %247 = vmatpush.msra.mxu0 0.0
    %248 = vmatpush.msra.mxu0 0.0
    %249 = vmatpush.msra.mxu0 0.0
    %250 = vmatpush.msra.mxu0 %v171
    %251 = vmatpush.msra.mxu0 %v170
    %252 = vmatpush.msra.mxu0 %v169
    %253 = vmatpush.msra.mxu0 %v168
    %254 = vmatmul.f32.gmra.mxu0 %v236
    %v255 = vpop.f32.mrf.mxu0
    %v256 = vadd.f32 0.0, %v255
    %257 = vdwg.mxu0
    %v259 = vrot.slane %v256, 6
    %v261 = vadd.f32 %v163, %v259
    %v262 = vxor.u32 %v261, 2147483648
    %v263 = vmul.f32 %v262, 1.442695
    %v264 = vpow.pop %v263
    %v265 = vadd.f32 %v264, 1.0
    %v266 = vrcp.pop %v265
    %v267 = vmul.f32 %v265, %v266
    %v268 = vsub.f32 1.0, %v267
    %v269 = vmul.f32 %v266, %v268
    %v270 = vadd.f32 %v266, %v269
    %vm271 = vweird.f32 %v265
    %vm272 = vweird.f32 %v266
    %vm273 = vmor %vm271, %vm272
    %v274 = vsel %vm273, %v266, %v270
    %v275 = vand.u32 2147483647, %v265
    %vm276 = vcmp.eq.f32.partialorder %v275, 8.507059e+37
    %v277 = vand.u32 %v265, 2147483648
    %v278 = vor.u32 1.1754944e-38, %v277
    %v279 = vsel %vm276, %v278, %v274
    %v280 = vmul.f32 1.0, %v279
    %v281 = vtanh.pop %v261
    %v283 = vrot.slane %v226, 6
    %v285 = vmul.f32 %v280, %v283
    %287 = vrot.lane.b32.xlu0 %v281, 64
    %v288 = vpop.permute.xlu0 %287
    %v290 = vmul.f32 %v280, %v288
    %292 = vrot.lane.b32.xlu0 %v290, 32
    %v293 = vpop.permute.xlu0 %292
    %v295 = vadd.f32 %v285, %v293
    %v296 = vtanh.pop %v295
    %298 = vrot.lane.b32.xlu0 %v296, 64
    %v299 = vpop.permute.xlu0 %298
    %v301 = vmul.f32 %v280, %v299
    %v303 = vrot.slane %v301, 2
    %304 = vrot.lane.b32.xlu0 %v303, 32
    %v305 = vpop.permute.xlu0 %304
    %v306 = vsel %vm99, %v305, 0
    %308 = vmatpush.msra.mxu0 0.0
    %309 = vmatpush.msra.mxu0 0.0
    %310 = vmatpush.msra.mxu0 0.0
    %311 = vmatpush.msra.mxu0 0.0
    %312 = vmatpush.msra.mxu0 0.0
    %313 = vmatpush.msra.mxu0 0.0
    %314 = vmatpush.msra.mxu0 0.0
    %315 = vmatpush.msra.mxu0 0.0
    %316 = vmatpush.msra.mxu0 0.0
    %317 = vmatpush.msra.mxu0 0.0
    %318 = vmatpush.msra.mxu0 0.0
    %319 = vmatpush.msra.mxu0 0.0
    %320 = vmatpush.msra.mxu0 %v171
    %321 = vmatpush.msra.mxu0 %v170
    %322 = vmatpush.msra.mxu0 %v169
    %323 = vmatpush.msra.mxu0 %v168
    %324 = vmatmul.f32.gmra.mxu0 %v306
    %v325 = vpop.f32.mrf.mxu0
    %v326 = vadd.f32 0.0, %v325
    %327 = vdwg.mxu0
    %v329 = vrot.slane %v326, 4
    %v331 = vadd.f32 %v163, %v329
    %v332 = vxor.u32 %v331, 2147483648
    %v333 = vmul.f32 %v332, 1.442695
    %v334 = vpow.pop %v333
    %v335 = vadd.f32 %v334, 1.0
    %v336 = vrcp.pop %v335
    %v337 = vmul.f32 %v335, %v336
    %v338 = vsub.f32 1.0, %v337
    %v339 = vmul.f32 %v336, %v338
    %v340 = vadd.f32 %v336, %v339
    %vm341 = vweird.f32 %v335
    %vm342 = vweird.f32 %v336
    %vm343 = vmor %vm341, %vm342
    %v344 = vsel %vm343, %v336, %v340
    %v345 = vand.u32 2147483647, %v335
    %vm346 = vcmp.eq.f32.partialorder %v345, 8.507059e+37
    %v347 = vand.u32 %v335, 2147483648
    %v348 = vor.u32 1.1754944e-38, %v347
    %v349 = vsel %vm346, %v348, %v344
    %v350 = vmul.f32 1.0, %v349
    %v351 = vtanh.pop %v331
    %v353 = vrot.slane %v295, 6
    %v355 = vmul.f32 %v350, %v353
    %357 = vrot.lane.b32.xlu0 %v351, 64
    %v358 = vpop.permute.xlu0 %357
    %v360 = vmul.f32 %v350, %v358
    %362 = vrot.lane.b32.xlu0 %v360, 32
    %v363 = vpop.permute.xlu0 %362
    %v365 = vadd.f32 %v355, %v363
    %v366 = vtanh.pop %v365
    %368 = vrot.lane.b32.xlu0 %v366, 64
    %v369 = vpop.permute.xlu0 %368
    %v371 = vmul.f32 %v350, %v369
    %v373 = vrot.slane %v371, 4
    %374 = vrot.lane.b32.xlu0 %v373, 32
    %v375 = vpop.permute.xlu0 %374
    %v376 = vsel %vm99, %v375, 0
    %378 = vmatpush.msra.mxu0 0.0
    %379 = vmatpush.msra.mxu0 0.0
    %380 = vmatpush.msra.mxu0 0.0
    %381 = vmatpush.msra.mxu0 0.0
    %382 = vmatpush.msra.mxu0 0.0
    %383 = vmatpush.msra.mxu0 0.0
    %384 = vmatpush.msra.mxu0 0.0
    %385 = vmatpush.msra.mxu0 0.0
    %386 = vmatpush.msra.mxu0 0.0
    %387 = vmatpush.msra.mxu0 0.0
    %388 = vmatpush.msra.mxu0 0.0
    %389 = vmatpush.msra.mxu0 0.0
    %390 = vmatpush.msra.mxu0 %v171
    %391 = vmatpush.msra.mxu0 %v170
    %392 = vmatpush.msra.mxu0 %v169
    %393 = vmatpush.msra.mxu0 %v168
    %394 = vmatmul.f32.gmra.mxu0 %v376
    %v395 = vpop.f32.mrf.mxu0
    %v396 = vadd.f32 0.0, %v395
    %397 = vdwg.mxu0
    %v399 = vrot.slane %v396, 2
    %v401 = vadd.f32 %v163, %v399
    %v402 = vxor.u32 %v401, 2147483648
    %v403 = vmul.f32 %v402, 1.442695
    %v404 = vpow.pop %v403
    %v405 = vadd.f32 %v404, 1.0
    %v406 = vrcp.pop %v405
    %v407 = vmul.f32 %v405, %v406
    %v408 = vsub.f32 1.0, %v407
    %v409 = vmul.f32 %v406, %v408
    %v410 = vadd.f32 %v406, %v409
    %vm411 = vweird.f32 %v405
    %vm412 = vweird.f32 %v406
    %vm413 = vmor %vm411, %vm412
    %v414 = vsel %vm413, %v406, %v410
    %v415 = vand.u32 2147483647, %v405
    %vm416 = vcmp.eq.f32.partialorder %v415, 8.507059e+37
    %v417 = vand.u32 %v405, 2147483648
    %v418 = vor.u32 1.1754944e-38, %v417
    %v419 = vsel %vm416, %v418, %v414
    %v420 = vmul.f32 1.0, %v419
    %v421 = vtanh.pop %v401
    %v423 = vrot.slane %v365, 6
    %v425 = vmul.f32 %v420, %v423
    %427 = vrot.lane.b32.xlu0 %v421, 64
    %v428 = vpop.permute.xlu0 %427
    %v430 = vmul.f32 %v420, %v428
    %432 = vrot.lane.b32.xlu0 %v430, 32
    %v433 = vpop.permute.xlu0 %432
    %v435 = vadd.f32 %v425, %v433
    %v436 = vtanh.pop %v435
    %438 = vrot.lane.b32.xlu0 %v436, 64
    %v439 = vpop.permute.xlu0 %438
    %v441 = vmul.f32 %v420, %v439
    %v443 = vrot.slane %v441, 6
    %444 = vrot.lane.b32.xlu0 %v443, 32
    %v445 = vpop.permute.xlu0 %444
    %v446 = vsel %vm99, %v445, 0
    %448 = vmatpush.msra.mxu0 0.0
    %449 = vmatpush.msra.mxu0 0.0
    %450 = vmatpush.msra.mxu0 0.0
    %451 = vmatpush.msra.mxu0 0.0
    %452 = vmatpush.msra.mxu0 0.0
    %453 = vmatpush.msra.mxu0 0.0
    %454 = vmatpush.msra.mxu0 0.0
    %455 = vmatpush.msra.mxu0 0.0
    %456 = vmatpush.msra.mxu0 0.0
    %457 = vmatpush.msra.mxu0 0.0
    %458 = vmatpush.msra.mxu0 0.0
    %459 = vmatpush.msra.mxu0 0.0
    %460 = vmatpush.msra.mxu0 %v171
    %461 = vmatpush.msra.mxu0 %v170
    %462 = vmatpush.msra.mxu0 %v169
    %463 = vmatpush.msra.mxu0 %v168
    %464 = vmatmul.f32.gmra.mxu0 %v446
    %v465 = vpop.f32.mrf.mxu0
    %v466 = vadd.f32 0.0, %v465
    %467 = vdwg.mxu0
    %v468 = vadd.f32 %v166, %v466
    %v469 = vxor.u32 %v468, 2147483648
    %v470 = vmul.f32 %v469, 1.442695
    %v471 = vpow.pop %v470
    %v472 = vadd.f32 %v471, 1.0
    %v473 = vrcp.pop %v472
    %v474 = vmul.f32 %v472, %v473
    %v475 = vsub.f32 1.0, %v474
    %v476 = vmul.f32 %v473, %v475
    %v477 = vadd.f32 %v473, %v476
    %vm478 = vweird.f32 %v472
    %vm479 = vweird.f32 %v473
    %vm480 = vmor %vm478, %vm479
    %v481 = vsel %vm480, %v473, %v477
    %v482 = vand.u32 2147483647, %v472
    %vm483 = vcmp.eq.f32.partialorder %v482, 8.507059e+37
    %v484 = vand.u32 %v472, 2147483648
    %v485 = vor.u32 1.1754944e-38, %v484
    %v486 = vsel %vm483, %v485, %v481
    %v487 = vmul.f32 1.0, %v486
    %v488 = vtanh.pop %v468
    %v490 = vrot.slane %v435, 6
    %v492 = vmul.f32 %v487, %v490
    %494 = vrot.lane.b32.xlu0 %v488, 64
    %v495 = vpop.permute.xlu0 %494
    %v497 = vmul.f32 %v487, %v495
    %499 = vrot.lane.b32.xlu0 %v497, 32
    %v500 = vpop.permute.xlu0 %499
    %v502 = vadd.f32 %v492, %v500
    %v503 = vtanh.pop %v502
    %505 = vrot.lane.b32.xlu0 %v503, 64
    %v506 = vpop.permute.xlu0 %505
    %v508 = vmul.f32 %v487, %v506
    %510 = vrot.lane.b32.xlu0 %v508, 32
    %v511 = vpop.permute.xlu0 %510
    %v512 = vsel %vm99, %v511, 0
    %514 = vmatpush.msra.mxu0 0.0
    %515 = vmatpush.msra.mxu0 0.0
    %516 = vmatpush.msra.mxu0 0.0
    %517 = vmatpush.msra.mxu0 0.0
    %518 = vmatpush.msra.mxu0 0.0
    %519 = vmatpush.msra.mxu0 0.0
    %520 = vmatpush.msra.mxu0 0.0
    %521 = vmatpush.msra.mxu0 0.0
    %522 = vmatpush.msra.mxu0 0.0
    %523 = vmatpush.msra.mxu0 0.0
    %524 = vmatpush.msra.mxu0 0.0
    %525 = vmatpush.msra.mxu0 0.0
    %526 = vmatpush.msra.mxu0 %v171
    %527 = vmatpush.msra.mxu0 %v170
    %528 = vmatpush.msra.mxu0 %v169
    %529 = vmatpush.msra.mxu0 %v168
    %530 = vmatmul.f32.gmra.mxu0 %v512
    %v531 = vpop.f32.mrf.mxu0
    %v532 = vadd.f32 0.0, %v531
    %533 = vdwg.mxu0
    %v535 = vrot.slane %v532, 6
    %v537 = vadd.f32 %v166, %v535
    %v538 = vxor.u32 %v537, 2147483648
    %v539 = vmul.f32 %v538, 1.442695
    %v540 = vpow.pop %v539
    %v541 = vadd.f32 %v540, 1.0
    %v542 = vrcp.pop %v541
    %v543 = vmul.f32 %v541, %v542
    %v544 = vsub.f32 1.0, %v543
    %v545 = vmul.f32 %v542, %v544
    %v546 = vadd.f32 %v542, %v545
    %vm547 = vweird.f32 %v541
    %vm548 = vweird.f32 %v542
    %vm549 = vmor %vm547, %vm548
    %v550 = vsel %vm549, %v542, %v546
    %v551 = vand.u32 2147483647, %v541
    %vm552 = vcmp.eq.f32.partialorder %v551, 8.507059e+37
    %v553 = vand.u32 %v541, 2147483648
    %v554 = vor.u32 1.1754944e-38, %v553
    %v555 = vsel %vm552, %v554, %v550
    %v556 = vmul.f32 1.0, %v555
    %v557 = vtanh.pop %v537
    %v559 = vrot.slane %v502, 6
    %v561 = vmul.f32 %v556, %v559
    %563 = vrot.lane.b32.xlu0 %v557, 64
    %v564 = vpop.permute.xlu0 %563
    %v566 = vmul.f32 %v556, %v564
    %568 = vrot.lane.b32.xlu0 %v566, 32
    %v569 = vpop.permute.xlu0 %568
    %v571 = vadd.f32 %v561, %v569
    %v572 = vtanh.pop %v571
    %574 = vrot.lane.b32.xlu0 %v572, 64
    %v575 = vpop.permute.xlu0 %574
    %v577 = vmul.f32 %v556, %v575
    %v579 = vrot.slane %v577, 2
    %580 = vrot.lane.b32.xlu0 %v579, 32
    %v581 = vpop.permute.xlu0 %580
    %v582 = vsel %vm99, %v581, 0
    %584 = vmatpush.msra.mxu0 0.0
    %585 = vmatpush.msra.mxu0 0.0
    %586 = vmatpush.msra.mxu0 0.0
    %587 = vmatpush.msra.mxu0 0.0
    %588 = vmatpush.msra.mxu0 0.0
    %589 = vmatpush.msra.mxu0 0.0
    %590 = vmatpush.msra.mxu0 0.0
    %591 = vmatpush.msra.mxu0 0.0
    %592 = vmatpush.msra.mxu0 0.0
    %593 = vmatpush.msra.mxu0 0.0
    %594 = vmatpush.msra.mxu0 0.0
    %595 = vmatpush.msra.mxu0 0.0
    %596 = vmatpush.msra.mxu0 %v171
    %597 = vmatpush.msra.mxu0 %v170
    %598 = vmatpush.msra.mxu0 %v169
    %599 = vmatpush.msra.mxu0 %v168
    %600 = vmatmul.f32.gmra.mxu0 %v582
    %v601 = vpop.f32.mrf.mxu0
    %v602 = vadd.f32 0.0, %v601
    %603 = vdwg.mxu0
    %v605 = vrot.slane %v602, 4
    %v607 = vadd.f32 %v166, %v605
    %v608 = vxor.u32 %v607, 2147483648
    %v609 = vmul.f32 %v608, 1.442695
    %v610 = vpow.pop %v609
    %v611 = vadd.f32 %v610, 1.0
    %v612 = vrcp.pop %v611
    %v613 = vmul.f32 %v611, %v612
    %v614 = vsub.f32 1.0, %v613
    %v615 = vmul.f32 %v612, %v614
    %v616 = vadd.f32 %v612, %v615
    %vm617 = vweird.f32 %v611
    %vm618 = vweird.f32 %v612
    %vm619 = vmor %vm617, %vm618
    %v620 = vsel %vm619, %v612, %v616
    %v621 = vand.u32 2147483647, %v611
    %vm622 = vcmp.eq.f32.partialorder %v621, 8.507059e+37
    %v623 = vand.u32 %v611, 2147483648
    %v624 = vor.u32 1.1754944e-38, %v623
    %v625 = vsel %vm622, %v624, %v620
    %v626 = vmul.f32 1.0, %v625
    %v627 = vtanh.pop %v607
    %v629 = vrot.slane %v571, 6
    %v631 = vmul.f32 %v626, %v629
    %633 = vrot.lane.b32.xlu0 %v627, 64
    %v634 = vpop.permute.xlu0 %633
    %v636 = vmul.f32 %v626, %v634
    %638 = vrot.lane.b32.xlu0 %v636, 32
    %v639 = vpop.permute.xlu0 %638
    %v641 = vadd.f32 %v631, %v639
    %v642 = vtanh.pop %v641
    %644 = vrot.lane.b32.xlu0 %v642, 64
    %v645 = vpop.permute.xlu0 %644
    %v647 = vmul.f32 %v626, %v645
    %v649 = vrot.slane %v647, 4
    %650 = vrot.lane.b32.xlu0 %v649, 32
    %v651 = vpop.permute.xlu0 %650
    %v652 = vsel %vm99, %v651, 0
    %654 = vmatpush.msra.mxu0 0.0
    %655 = vmatpush.msra.mxu0 0.0
    %656 = vmatpush.msra.mxu0 0.0
    %657 = vmatpush.msra.mxu0 0.0
    %658 = vmatpush.msra.mxu0 0.0
    %659 = vmatpush.msra.mxu0 0.0
    %660 = vmatpush.msra.mxu0 0.0
    %661 = vmatpush.msra.mxu0 0.0
    %662 = vmatpush.msra.mxu0 0.0
    %663 = vmatpush.msra.mxu0 0.0
    %664 = vmatpush.msra.mxu0 0.0
    %665 = vmatpush.msra.mxu0 0.0
    %666 = vmatpush.msra.mxu0 %v171
    %667 = vmatpush.msra.mxu0 %v170
    %668 = vmatpush.msra.mxu0 %v169
    %669 = vmatpush.msra.mxu0 %v168
    %670 = vmatmul.f32.gmra.mxu0 %v652
    %v671 = vpop.f32.mrf.mxu0
    %v672 = vadd.f32 0.0, %v671
    %673 = vdwg.mxu0
    %v675 = vrot.slane %v672, 2
    %v677 = vadd.f32 %v166, %v675
    %v678 = vxor.u32 %v677, 2147483648
    %v679 = vmul.f32 %v678, 1.442695
    %v680 = vpow.pop %v679
    %v681 = vadd.f32 %v680, 1.0
    %v682 = vrcp.pop %v681
    %v683 = vmul.f32 %v681, %v682
    %v684 = vsub.f32 1.0, %v683
    %v685 = vmul.f32 %v682, %v684
    %v686 = vadd.f32 %v682, %v685
    %vm687 = vweird.f32 %v681
    %vm688 = vweird.f32 %v682
    %vm689 = vmor %vm687, %vm688
    %v690 = vsel %vm689, %v682, %v686
    %v691 = vand.u32 2147483647, %v681
    %vm692 = vcmp.eq.f32.partialorder %v691, 8.507059e+37
    %v693 = vand.u32 %v681, 2147483648
    %v694 = vor.u32 1.1754944e-38, %v693
    %v695 = vsel %vm692, %v694, %v690
    %v696 = vmul.f32 1.0, %v695
    %v697 = vtanh.pop %v677
    %v699 = vrot.slane %v641, 6
    %v701 = vmul.f32 %v696, %v699
    %703 = vrot.lane.b32.xlu0 %v697, 64
    %v704 = vpop.permute.xlu0 %703
    %v706 = vmul.f32 %v696, %v704
    %708 = vrot.lane.b32.xlu0 %v706, 32
    %v709 = vpop.permute.xlu0 %708
    %v711 = vadd.f32 %v701, %v709
    %v712 = vtanh.pop %v711
    %714 = vrot.lane.b32.xlu0 %v712, 64
    %v715 = vpop.permute.xlu0 %714
    %v717 = vmul.f32 %v696, %v715
    %v718 = vmax.f32 %v717, 0.0
    %v719 = vld [vmem:[%s6] sm:$0xff]
    %v720 = vld [vmem:[%s6 + $0x8] sm:$0xff]
    %v721 = vld [vmem:[%s6 + $0x10] sm:$0xff]
    %v722 = vld [vmem:[%s6 + $0x18] sm:$0xff]
    %v723 = vld [vmem:[%s7] sm:$0x1]
    %v725 = vperm.slane %v723, 0
    %v728 = vrot.slane %v718, 6
    %729 = vrot.lane.b32.xlu0 %v728, 32
    %v730 = vpop.permute.xlu0 %729
    %v731 = vsel %vm99, %v730, 0
    %733 = vmatpush.msra.mxu0 0.0
    %734 = vmatpush.msra.mxu0 0.0
    %735 = vmatpush.msra.mxu0 0.0
    %736 = vmatpush.msra.mxu0 0.0
    %737 = vmatpush.msra.mxu0 0.0
    %738 = vmatpush.msra.mxu0 0.0
    %739 = vmatpush.msra.mxu0 0.0
    %740 = vmatpush.msra.mxu0 0.0
    %741 = vmatpush.msra.mxu0 0.0
    %742 = vmatpush.msra.mxu0 0.0
    %743 = vmatpush.msra.mxu0 0.0
    %744 = vmatpush.msra.mxu0 0.0
    %745 = vmatpush.msra.mxu0 %v722
    %746 = vmatpush.msra.mxu0 %v721
    %747 = vmatpush.msra.mxu0 %v720
    %748 = vmatpush.msra.mxu0 %v719
    %749 = vmatmul.f32.gmra.mxu0 %v731
    %v750 = vpop.f32.mrf.mxu0
    %v751 = vadd.f32 %v725, %v750
    %752 = vdwg.mxu0
    %vm753 = vcmask 25600
    %754 = vst.msk [vmem:[#allocation6] sm:$0x3] %vm753, %v751
    // Predicated region
    $region38: #{tpu_custom_call.1} parent=1 // pred_check
      _
    $region39: #{tpu_custom_call.1} parent=1 // pred_check_branch
      %756 = sbr.rel (0) target = $region41
    $region40: #{tpu_custom_call.1} parent=1 // pred_region
      %758 = vsyncadd [#allocation5], 0
      %s760 = sshll.u32 [#allocation6], 4
      %s761 = int_to_ptr.vmem [resolvable:$true] %s760
      %s762 = sshll.u32 %s8, 4
      %s763 = int_to_ptr.hbm [resolvable:$true] %s762
      %765 = dma.vmem_to_hbm [thread:$0]  %s761, 32, %s763, [#allocation5]
    $region41: #{tpu_custom_call.1} parent=1 // pred_fallthru
      _
    // Predicated region
    $region42: #{tpu_custom_call.1} parent=1 // pred_check
      _
    $region43: #{tpu_custom_call.1} parent=1 // pred_check_branch
      %767 = sbr.rel (0) target = $region45
    $region44: #{tpu_custom_call.1} parent=1 // pred_region
      %769 = dma.done [#allocation5], 32
    $region45: #{tpu_custom_call.1} parent=1 // pred_fallthru
      _
    %770 = vsyncpa [#allocation4], 1
    %771 = vsyncpa [#allocation5], 1

</llo_original>
